<compile_context>
chip_gen: v7x
topology: tpu7x:2x2x1
jax: 0.10.0
libtpu: 0.0.40
codegen_flags: <defaults>
</compile_context>

<pallas_src>
import functools
import math

import jax
import jax.numpy as jnp
from jax import lax
from jax.experimental import pallas as pl
from jax.experimental.pallas import tpu as pltpu


# ---------------------------------------------------------------------------
# Kernel
# ---------------------------------------------------------------------------
def _rope_kernel(x_ref, cos_ref, sin_ref, o_ref, *, head_dim, half, lanes):
    """out = x * cos + rotate_half(x) * sin, per head of width `head_dim`.

    x_ref   : (T, G, lanes)  input block (native dtype; G lane-rows on sublanes)
    cos_ref : (T, 1, lanes)  per-position cos pattern (broadcasts over the G sublanes)
    sin_ref : (T, 1, lanes)  SIGNED sin pattern: per head = concat(-sin_half, +sin_half)

    rotate_half(x)*sin is realized with XLU lane rolls (free slot vs. VPU):
      * lanes == head_dim : roll(x, half) wraps exactly inside the head, so a single roll
        suffices:  out = x*cos + roll(x, half)*sin_signed.
      * lanes  > head_dim : a full-row roll would wrap across head boundaries, so we take
        roll(x,+half) on the upper half-lanes of each head and roll(x,-half) on the lower
        half-lanes; the wrapped lanes of each roll are never selected, so correctness does
        not depend on the wrap values.  (head_dim | 128 here, so head_dim is a power of two
        and the lane mask is a cheap bitwise-and.)
    """
    x = x_ref[...]
    cos = cos_ref[...]
    sin = sin_ref[...]
    if lanes == head_dim:
        rot = pltpu.roll(x, half, 2)                      # wrap == rotate_half, no mask
    else:
        r_fwd = pltpu.roll(x, half, 2)                    # lane i <- x[i - half]
        r_bwd = pltpu.roll(x, lanes - half, 2)            # lane i <- x[i + half]
        lane = lax.broadcasted_iota(jnp.int32, (1, 1, lanes), 2)
        upper = (lane & (head_dim - 1)) >= half           # head_dim is a power of two
        rot = jnp.where(upper, r_fwd, r_bwd)
    o_ref[...] = (x * cos + rot * sin).astype(o_ref.dtype)


# ---------------------------------------------------------------------------
# Tiling heuristics
# ---------------------------------------------------------------------------
def _vmem_plan():
    """(per-tile x budget bytes, vmem_limit_bytes), sized per TPU generation."""
    try:
        cap = int(getattr(pltpu.get_tpu_info(), "vmem_capacity_bytes", 0)) or (64 << 20)
    except Exception:
        cap = 64 << 20                      # conservative default (v7x-sized)
    if cap >= (100 << 20):                  # v5e / v6e: 128 MiB VMEM -> bigger tiles
        return 4 << 20, 48 << 20
    return 2 << 20, 28 << 20                # v7x: 64 MiB per TensorCore -> stay well under


def _pick_group(n, cap=256):
    """Largest multiple-of-8 divisor of n (<= cap) for dense sublanes; else n (full dim)."""
    best = None
    g = 8
    while g <= min(n, cap):
        if n % g == 0:
            best = g
        g += 8
    return best if best is not None else n


def _pick_seq_tile(S, row_bytes, tile_budget, n_group_steps, min_total_steps=8):
    """Seq-tile rows: big enough to amortize the ~0.35us/step overhead, small enough to keep
    >= min_total_steps grid steps (software pipelining; >= ~4 steps/core on v7x)."""
    if S <= 8:
        return S
    t = max(8, (tile_budget // max(row_bytes, 1)) // 8 * 8)
    want_seq = -(-min_total_steps // max(1, n_group_steps))        # ceil
    if want_seq > 1:
        t = min(t, max(8, (S // want_seq) // 8 * 8))
    return min(t, max(8, (S // 8) * 8))


# ---------------------------------------------------------------------------
# pallas_call wrapper
# ---------------------------------------------------------------------------
def _rope_pallas(x3, cos3, sin3, *, head_dim, seq_tile, group, vmem_limit, donate=False):
    """x3: [S, M, L]; caches: [S, 1, L].  Returns x*cos + rotate_half(x)*sin per head."""
    S, M, L = x3.shape
    assert S % seq_tile == 0 and M % group == 0
    grid = (S // seq_tile, M // group)       # group axis innermost -> cache block reused
    kernel = functools.partial(_rope_kernel, head_dim=head_dim, half=head_dim // 2, lanes=L)
    extra = dict(input_output_aliases={0: 0}) if donate else {}
    return pl.pallas_call(
        kernel,
        out_shape=jax.ShapeDtypeStruct((S, M, L), x3.dtype),
        grid_spec=pltpu.PrefetchScalarGridSpec(
            num_scalar_prefetch=0,
            grid=grid,
            in_specs=[
                pl.BlockSpec((seq_tile, group, L), lambda i, j: (i, j, 0)),
                # per-tile cache blocks; j-invariant index -> fetched once per seq tile
                pl.BlockSpec((seq_tile, 1, L), lambda i, j: (i, 0, 0)),
                pl.BlockSpec((seq_tile, 1, L), lambda i, j: (i, 0, 0)),
            ],
            out_specs=pl.BlockSpec((seq_tile, group, L), lambda i, j: (i, j, 0)),
        ),
        compiler_params=pltpu.CompilerParams(
            dimension_semantics=("parallel", "parallel"),
            vmem_limit_bytes=vmem_limit,
        ),
        **extra,
    )(x3, cos3, sin3)


# ---------------------------------------------------------------------------
# Module
# ---------------------------------------------------------------------------
class RotaryPallas:
    """JAX/Pallas port of cramming's `Rotary` (seq_dim=0 layout [S, ..., D]).

    WARNING: `forward()` faithfully reproduces the upstream module, whose `rope_fn`
    computes the rotated tensor but RETURNS `torch.split(QK, ...)` — i.e. the *unrotated*
    query/key.  The real RoPE application lives in `single_forward()`.
    """

    def __init__(self, dim, base=10000, def_seq_length=128, seq_dim=0):
        self.dim = int(dim)
        self.base = float(base)
        self.seq_len_cached = int(def_seq_length)
        self.seq_dim = seq_dim
        self.inv_freq = 1.0 / (
            self.base ** (jnp.arange(0, dim, 2, dtype=jnp.float32) / dim)
        )
        self.cos_cached, self.sin_cached = self._get_cos_sin()
        self._pat_cache = {}   # (S, L, dtype) -> (cos_pat, sin_signed_pat)

    def _get_cos_sin(self):
        t = jnp.arange(self.seq_len_cached, dtype=jnp.float32)
        freqs = jnp.einsum("i,j->ij", t, self.inv_freq)
        emb = jnp.concatenate([freqs, freqs], axis=-1)
        if self.seq_dim == 0:
            return jnp.cos(emb)[:, None, None, :], jnp.sin(emb)[:, None, None, :]
        return jnp.cos(emb)[None, :, None, :], jnp.sin(emb)[None, :, None, :]

    def _kernel_caches(self, S, L, dtype):
        """cos pattern + sign-folded sin pattern, tiled to lane width L, shape (S, 1, L)."""
        key = (S, L, jnp.dtype(dtype).name)
        hit = self._pat_cache.get(key)
        if hit is not None:
            return hit
        D, half = self.dim, self.dim // 2
        cos2 = self.cos_cached[:S].reshape(S, D)
        sin2 = self.sin_cached[:S].reshape(S, D)
        # signed sin per head = concat(-sin_half, +sin_half); the sign of rotate_half is
        # folded here so the kernel only needs one sin operand.
        sin_signed = jnp.concatenate([-sin2[:, :half], sin2[:, :half]], axis=-1)
        reps = L // D
        # TODO(synk): bf16 caches trade ~1e-3 relative sin/cos error for half the cache
        # traffic; keep f32 caches (dtype=float32) if long-context accuracy matters.
        cos_pat = jnp.tile(cos2, (1, reps)).reshape(S, 1, L).astype(dtype)
        sin_pat = jnp.tile(sin_signed, (1, reps)).reshape(S, 1, L).astype(dtype)
        self._pat_cache[key] = (cos_pat, sin_pat)
        return cos_pat, sin_pat

    def _apply(self, x, donate=False):
        assert self.seq_dim == 0, "Pallas path implemented for seq_dim=0 layout [S, ..., D]"
        # TODO(synk): unlike torch's get_cos_sin_cache, the cache is not regrown for S >
        # def_seq_length; it is fixed at construction time.
        S, D = x.shape[0], x.shape[-1]
        assert D == self.dim and D % 2 == 0
        assert S <= self.seq_len_cached, "sequence longer than cached cos/sin"
        W = math.prod(x.shape[1:])

        # Lane width: pack whole heads per 128-lane row when shapes allow (D | 128 => D is a
        # power of two => cheap bitwise lane mask); otherwise lanes = D (single-roll path).
        L = 128 if (W % 128 == 0 and 128 % D == 0) else D
        M = W // L
        x3 = x.reshape(S, M, L)               # contiguous regrouping, no data movement

        dtype = x.dtype                       # bf16 stays bf16 (native VALU on v6e/v7x)
        cos_pat, sin_pat = self._kernel_caches(S, L, dtype)

        tile_budget, vmem_limit = _vmem_plan()
        group = _pick_group(M)
        itemsize = jnp.dtype(dtype).itemsize
        row_bytes = (-(-group // 8) * 8) * L * itemsize       # sublane-padded row cost
        seq_tile = _pick_seq_tile(S, row_bytes, tile_budget, M // group)

        # Pad the seq axis so every grid step sees a full tile (a non-composite S would
        # otherwise force degenerate tiles).  Demo shapes never hit this.
        S_pad = -(-S // seq_tile) * seq_tile
        if S_pad != S:
            pad = [(0, S_pad - S), (0, 0), (0, 0)]
            x3 = jnp.pad(x3, pad)
            cos_pat = jnp.pad(cos_pat, pad)
            sin_pat = jnp.pad(sin_pat, pad)

        out3 = _rope_pallas(
            x3, cos_pat, sin_pat,
            head_dim=D, seq_tile=seq_tile, group=group,
            vmem_limit=vmem_limit, donate=donate,
        )
        if S_pad != S:
            out3 = out3[:S]
        return out3.reshape(x.shape)

    def forward(self, query_layer, key_layer):
        """Matches upstream exactly: rope_fn computes the rotated tensor but returns
        torch.split(QK, ...) — the *unrotated* q/k.  The dead rotation is skipped."""
        return query_layer, key_layer

    def single_forward(self, inputs, donate=False):
        """inputs * cos + rotate_half(inputs) * sin — the actual RoPE hot path."""
        return self._apply(inputs, donate=donate)

    @staticmethod
    def rotate_half(x):
        h = x.shape[-1] // 2
        return jnp.concatenate([-x[..., h:], x[..., :h]], axis=-1)


# ---------------------------------------------------------------------------
# Demo / correctness check
# ---------------------------------------------------------------------------
if __name__ == "__main__":
    S, B, H, D = 16, 2, 4, 64
    key = jax.random.PRNGKey(0)
    kq, kk = jax.random.split(key)
    q = jax.random.normal(kq, (S, B, H, D), dtype=jnp.float32)
    k = jax.random.normal(kk, (S, B, H, D), dtype=jnp.float32)

    rot = RotaryPallas(dim=D, base=10000, def_seq_length=S, seq_dim=0)

    # forward(): upstream returns the *unrotated* q/k split — reproduced faithfully.
    q_out, k_out = rot.forward(q, k)
    jax.block_until_ready((q_out, k_out))

    # single_forward(): packed path (two 64-wide heads per 128-lane row, 2 rolls + select).
    out = jax.block_until_ready(rot.single_forward(q))

    # lanes == D path (single roll, no mask): single-head input.
    q_small = q[:, :1, :1, :]
    out_small = jax.block_until_ready(rot.single_forward(q_small))

    # bf16-native compute path (bf16 x and caches; no f32 casts inside the kernel).
    q_bf16 = q.astype(jnp.bfloat16)
    out_bf16 = jax.block_until_ready(rot.single_forward(q_bf16))

    # Pure-JAX references against the original (unfolded) cos/sin caches.
    cos4 = rot.cos_cached[:S]
    sin4 = rot.sin_cached[:S]
    ref = q * cos4 + RotaryPallas.rotate_half(q) * sin4
    ref_small = q_small * cos4 + RotaryPallas.rotate_half(q_small) * sin4

    assert jnp.allclose(q_out, q) and jnp.allclose(k_out, k)
    assert jnp.allclose(out, ref, atol=1e-5, rtol=1e-5), float(jnp.max(jnp.abs(out - ref)))
    assert jnp.allclose(out_small, ref_small, atol=1e-5, rtol=1e-5), float(
        jnp.max(jnp.abs(out_small - ref_small))
    )
    assert jnp.allclose(out_bf16.astype(jnp.float32), ref, atol=0.25, rtol=0.05), float(
        jnp.max(jnp.abs(out_bf16.astype(jnp.float32) - ref))
    )
    print("KERNEL_OK")
</pallas_src>

<mosaic_0001>
module attributes {stable_mosaic.version = 11 : i64} {
  func.func @_rope_kernel(%arg0: i32, %arg1: i32, %arg2: memref<8x4x128xf32, #tpu.memory_space<vmem>>, %arg3: memref<8x1x128xf32, #tpu.memory_space<vmem>>, %arg4: memref<8x1x128xf32, #tpu.memory_space<vmem>>, %arg5: memref<8x4x128xf32, #tpu.memory_space<vmem>>) attributes {dimension_semantics = [#tpu.dimension_semantics<parallel>, #tpu.dimension_semantics<parallel>], iteration_bounds = array<i64: 2, 1>, scalar_prefetch = 0 : i64, scratch_operands = 0 : i64, tpu.core_type = #tpu.core_type<tc>, window_params = [{transform_indices = @transform_0, window_bounds = array<i64: 8, 4, 128>}, {transform_indices = @transform_1, window_bounds = array<i64: 8, 1, 128>}, {transform_indices = @transform_2, window_bounds = array<i64: 8, 1, 128>}, {transform_indices = @transform_3, window_bounds = array<i64: 8, 4, 128>}]} {
    %c0 = arith.constant 0 : index
    %c0_0 = arith.constant 0 : index
    %c0_1 = arith.constant 0 : index
    %0 = vector.load %arg2[%c0, %c0_0, %c0_1] : memref<8x4x128xf32, #tpu.memory_space<vmem>>, vector<8x4x128xf32>
    %c0_2 = arith.constant 0 : index
    %c0_3 = arith.constant 0 : index
    %c0_4 = arith.constant 0 : index
    %1 = vector.load %arg3[%c0_2, %c0_3, %c0_4] : memref<8x1x128xf32, #tpu.memory_space<vmem>>, vector<8x1x128xf32>
    %c0_5 = arith.constant 0 : index
    %c0_6 = arith.constant 0 : index
    %c0_7 = arith.constant 0 : index
    %2 = vector.load %arg4[%c0_5, %c0_6, %c0_7] : memref<8x1x128xf32, #tpu.memory_space<vmem>>, vector<8x1x128xf32>
    %c32_i32 = arith.constant 32 : i32
    %3 = tpu.dynamic_rotate %0 by %c32_i32 dim 2 : vector<8x4x128xf32>, i32 -> vector<8x4x128xf32>
    %c96_i32 = arith.constant 96 : i32
    %4 = tpu.dynamic_rotate %0 by %c96_i32 dim 2 : vector<8x4x128xf32>, i32 -> vector<8x4x128xf32>
    %5 = tpu.iota {dimensions = array<i32: 2>} : vector<1x1x128xi32>
    %c63_i32 = arith.constant 63 : i32
    %6 = vector.broadcast %c63_i32 : i32 to vector<1x1x128xi32>
    %7 = arith.andi %5, %6 : vector<1x1x128xi32>
    %c32_i32_8 = arith.constant 32 : i32
    %8 = vector.broadcast %c32_i32_8 : i32 to vector<1x1x128xi32>
    %9 = arith.cmpi sge, %7, %8 : vector<1x1x128xi32>
    %10 = vector.shape_cast %9 : vector<1x1x128xi1> to vector<1x1x128xi1>
    %11 = vector.broadcast %10 : vector<1x1x128xi1> to vector<8x4x128xi1>
    %12 = arith.select %11, %3, %4 : vector<8x4x128xi1>, vector<8x4x128xf32>
    %13 = vector.broadcast %1 : vector<8x1x128xf32> to vector<8x4x128xf32>
    %14 = arith.mulf %0, %13 : vector<8x4x128xf32>
    %15 = vector.broadcast %2 : vector<8x1x128xf32> to vector<8x4x128xf32>
    %16 = arith.mulf %12, %15 : vector<8x4x128xf32>
    %17 = arith.addf %14, %16 : vector<8x4x128xf32>
    %c0_9 = arith.constant 0 : index
    %c0_10 = arith.constant 0 : index
    %c0_11 = arith.constant 0 : index
    %18 = vector.load %arg5[%c0_9, %c0_10, %c0_11] : memref<8x4x128xf32, #tpu.memory_space<vmem>>, vector<8x4x128xf32>
    tpu.vector_store %arg5[%c0_9, %c0_10, %c0_11], %17 {strides = array<i32>} : memref<8x4x128xf32, #tpu.memory_space<vmem>>, vector<8x4x128xf32>,
    return
  }
  func.func @transform_0(%arg0: i32, %arg1: i32) -> (i32, i32, i32) {
    %c0_i32 = arith.constant 0 : i32
    %c0_i32_0 = arith.constant 0 : i32
    return %arg0, %arg1, %c0_i32 : i32, i32, i32
  }
  func.func @transform_1(%arg0: i32, %arg1: i32) -> (i32, i32, i32) {
    %c0_i32 = arith.constant 0 : i32
    %c0_i32_0 = arith.constant 0 : i32
    %c0_i32_1 = arith.constant 0 : i32
    return %arg0, %c0_i32, %c0_i32_0 : i32, i32, i32
  }
  func.func @transform_2(%arg0: i32, %arg1: i32) -> (i32, i32, i32) {
    %c0_i32 = arith.constant 0 : i32
    %c0_i32_0 = arith.constant 0 : i32
    %c0_i32_1 = arith.constant 0 : i32
    return %arg0, %c0_i32, %c0_i32_0 : i32, i32, i32
  }
  func.func @transform_3(%arg0: i32, %arg1: i32) -> (i32, i32, i32) {
    %c0_i32 = arith.constant 0 : i32
    %c0_i32_0 = arith.constant 0 : i32
    return %arg0, %arg1, %c0_i32 : i32, i32, i32
  }
}

</mosaic_0001>

<llo_original>
// kernel: tpu_custom_call.1
$region0: #{tpu_custom_call.1}
  #allocation0 [shape = 'u32[]', space=smem, size = 0x4, offset = 0x4, fixed_abs, tag = 'smem constant byte address 0x4 - core index']
  #allocation1 [shape = 'u32[144,128]{1,0:T(1,128)}', space=vmem, size = 0x12000, scoped, tag = 'internal scratch']
  %s0 = inlined_call_operand.hbm [shape: f32[16,4,128], index: 0, kind: input, shape index: {}]
  %s1 = inlined_call_operand.hbm [shape: f32[16,1,128], index: 1, kind: input, shape index: {}]
  %s2 = inlined_call_operand.hbm [shape: f32[16,1,128], index: 2, kind: input, shape index: {}]
  %s3 = inlined_call_operand.hbm [shape: f32[16,4,128], index: 3, kind: output, shape index: {}]
  %s4 = sld [smem:[#allocation0]]
  $region57: #{tpu_custom_call.1} parent=0
    _
  %s6 = ssub.s32 1, %s4
  %s7 = scalar_select 0, %s6, %s4
  $region1: #{tpu_custom_call.1} parent=0
    #allocation2 [shape = 'u8[32768]{0}', space=vmem, size = 0x8000, scoped, tag = 'input window, operand 0']
    #allocation3 [shape = 's32[2]{0}', space=sflag, size = 0x8, scoped, tag = 'scoped memory for tpu_custom_call.1']
    #allocation4 [shape = 's32[2]{0}', space=sflag, size = 0x8, scoped, tag = 'scoped memory for tpu_custom_call.1']
    #allocation5 [shape = 'u8[8192]{0}', space=vmem, size = 0x2000, scoped, tag = 'input window, operand 1']
    #allocation6 [shape = 's32[2]{0}', space=sflag, size = 0x8, scoped, tag = 'scoped memory for tpu_custom_call.1']
    #allocation7 [shape = 'u8[8192]{0}', space=vmem, size = 0x2000, scoped, tag = 'input window, operand 2']
    #allocation8 [shape = 'u8[32768]{0}', space=vmem, size = 0x8000, scoped, tag = 'output window, operand 0']
    %8 = vsyncpa [#allocation3], 0
    %s9 = scalar_lea.sflag [#allocation3], 1
    %10 = vsyncpa %s9, 0
    %11 = vsyncpa [#allocation6], 0
    %s12 = scalar_lea.sflag [#allocation6], 1
    %13 = vsyncpa %s12, 0
    %14 = vsyncpa [#allocation4], 0
    %s15 = scalar_lea.sflag [#allocation4], 1
    %16 = vsyncpa %s15, 0
    loop: start=0, step=1, limit=4
    $region2: #{tpu_custom_call.1} parent=1 // loop_pre_header
      _
    $region3: #{tpu_custom_call.1} parent=1 // loop_header
      %s18 = sphi 0, %s22
      %p19 = scmp.ge.s32.totalorder %s18, 4
      %s25 = sphi 0, %s37
      %s26 = sphi 0, %s33
      %s27 = sphi 0, %s25
      %s28 = sphi 0, %s26
      %s29 = sphi 0, %s27
      %s30 = sphi 0, %s28
      %s42 = sphi 0, %s44
      %s45 = sphi 0, %s42
      %s46 = sphi 0, %s45
      %s62 = sphi 0, %s46
      %s68 = sphi 0, %s70
      %s71 = sphi 0, %s68
      %s72 = sphi 0, %s71
      %s88 = sphi 0, %s72
      %s94 = sphi 0, %s96
      %s97 = sphi 0, %s94
      %s98 = sphi 0, %s97
      %s114 = sphi 0, %s98
      %s122 = sphi 0, %s124
      %s125 = sphi 0, %s122
      %s126 = sphi 0, %s125
      %s142 = sphi 0, %s126
    $region4: #{tpu_custom_call.1} parent=1 // loop_header_branch
      %21 = sbr.rel (%p19) target = $region8
    $region5: #{tpu_custom_call.1} parent=1 // loop_body
      %s23 = ssub.s32 %s18, 1
      %s24 = ssub.s32 %s18, 2
      %s31 = sadd.s32 1, %s26
      %p32 = scmp.ge.s32.totalorder %s31, 1
      %s33 = scalar_select %p32, 0, %s31
      %s34 = sadd.s32 1, %s25
      %s35 = scalar_select %p32, %s34, %s25
      %p36 = scmp.ge.s32.totalorder %s35, 2
      %s37 = scalar_select %p36, 0, %s35
      %s38 = ssub.s32 %s25, %s37
      %s39 = ssub.s32 %s26, %s33
      %s40 = sor.u32 %s38, %s39
      %p41 = scmp.eq.s32.totalorder %s40, 0
      %s43 = sadd.s32 %s42, 1
      %s44 = scalar_select %p41, %s42, %s43
      %p47 = pneg %p41
      %p48 = scmp.eq.s32.totalorder %s18, 1
      %p49 = por %p47, %p48
      %p50 = scmp.ne.s32.totalorder %s42, %s45
      %p51 = scmp.eq.s32.totalorder %s18, 0
      %p52 = por %p50, %p51
      %p53 = scmp.ne.s32.totalorder %s42, %s45
      %p54 = scmp.eq.s32.totalorder %s23, 1
      %p55 = por %p53, %p54
      %p56 = scmp.ne.s32.totalorder %s45, %s46
      %p57 = scmp.eq.s32.totalorder %s23, 0
      %p58 = por %p56, %p57
      %p59 = scmp.ne.s32.totalorder %s45, %s46
      %p60 = scmp.eq.s32.totalorder %s24, 1
      %p61 = por %p59, %p60
      %p63 = scmp.ne.s32.totalorder %s46, %s62
      %p64 = scmp.eq.s32.totalorder %s24, 0
      %p65 = por %p63, %p64
      %s66 = ssub.s32 %s25, %s37
      %p67 = scmp.eq.s32.totalorder %s66, 0
      %s69 = sadd.s32 %s68, 1
      %s70 = scalar_select %p67, %s68, %s69
      %p73 = pneg %p67
      %p74 = scmp.eq.s32.totalorder %s18, 1
      %p75 = por %p73, %p74
      %p76 = scmp.ne.s32.totalorder %s68, %s71
      %p77 = scmp.eq.s32.totalorder %s18, 0
      %p78 = por %p76, %p77
      %p79 = scmp.ne.s32.totalorder %s68, %s71
      %p80 = scmp.eq.s32.totalorder %s23, 1
      %p81 = por %p79, %p80
      %p82 = scmp.ne.s32.totalorder %s71, %s72
      %p83 = scmp.eq.s32.totalorder %s23, 0
      %p84 = por %p82, %p83
      %p85 = scmp.ne.s32.totalorder %s71, %s72
      %p86 = scmp.eq.s32.totalorder %s24, 1
      %p87 = por %p85, %p86
      %p89 = scmp.ne.s32.totalorder %s72, %s88
      %p90 = scmp.eq.s32.totalorder %s24, 0
      %p91 = por %p89, %p90
      %s92 = ssub.s32 %s25, %s37
      %p93 = scmp.eq.s32.totalorder %s92, 0
      %s95 = sadd.s32 %s94, 1
      %s96 = scalar_select %p93, %s94, %s95
      %p99 = pneg %p93
      %p100 = scmp.eq.s32.totalorder %s18, 1
      %p101 = por %p99, %p100
      %p102 = scmp.ne.s32.totalorder %s94, %s97
      %p103 = scmp.eq.s32.totalorder %s18, 0
      %p104 = por %p102, %p103
      %p105 = scmp.ne.s32.totalorder %s94, %s97
      %p106 = scmp.eq.s32.totalorder %s23, 1
      %p107 = por %p105, %p106
      %p108 = scmp.ne.s32.totalorder %s97, %s98
      %p109 = scmp.eq.s32.totalorder %s23, 0
      %p110 = por %p108, %p109
      %p111 = scmp.ne.s32.totalorder %s97, %s98
      %p112 = scmp.eq.s32.totalorder %s24, 1
      %p113 = por %p111, %p112
      %p115 = scmp.ne.s32.totalorder %s98, %s114
      %p116 = scmp.eq.s32.totalorder %s24, 0
      %p117 = por %p115, %p116
      %s118 = ssub.s32 %s25, %s37
      %s119 = ssub.s32 %s26, %s33
      %s120 = sor.u32 %s118, %s119
      %p121 = scmp.eq.s32.totalorder %s120, 0
      %s123 = sadd.s32 %s122, 1
      %s124 = scalar_select %p121, %s122, %s123
      %p127 = pneg %p121
      %p128 = scmp.eq.s32.totalorder %s18, 1
      %p129 = por %p127, %p128
      %p130 = scmp.ne.s32.totalorder %s122, %s125
      %p131 = scmp.eq.s32.totalorder %s18, 0
      %p132 = por %p130, %p131
      %p133 = scmp.ne.s32.totalorder %s122, %s125
      %p134 = scmp.eq.s32.totalorder %s23, 1
      %p135 = por %p133, %p134
      %p136 = scmp.ne.s32.totalorder %s125, %s126
      %p137 = scmp.eq.s32.totalorder %s23, 0
      %p138 = por %p136, %p137
      %p139 = scmp.ne.s32.totalorder %s125, %s126
      %p140 = scmp.eq.s32.totalorder %s24, 1
      %p141 = por %p139, %p140
      %p143 = scmp.ne.s32.totalorder %s126, %s142
      %p144 = scmp.eq.s32.totalorder %s24, 0
      %p145 = por %p143, %p144
      %p146 = scmp.le.s32.totalorder 1, %s18
      %p147 = scmp.lt.s32.totalorder %s18, 3
      %p148 = pnand %p146, %p147
      %p149 = pneg %p148
      // Predicated region
      $region9: #{tpu_custom_call.1} parent=5 // pred_check
        _
      $region10: #{tpu_custom_call.1} parent=5 // pred_check_branch
        %151 = sbr.rel (%p148) target = $region12
      $region11: #{tpu_custom_call.1} parent=5 // pred_region
        %s152 = ssub.s32 %s18, 1
      $region12: #{tpu_custom_call.1} parent=5 // pred_fallthru
        _
      %p153 = scmp.lt.s32.totalorder %s18, 2
      // Predicated region
      $region13: #{tpu_custom_call.1} parent=5 // pred_check
        %p154 = pneg %p153
      $region14: #{tpu_custom_call.1} parent=5 // pred_check_branch
        %156 = sbr.rel (%p154) target = $region16
      $region15: #{tpu_custom_call.1} parent=5 // pred_region
        // Predicated region
        $region17: #{tpu_custom_call.1} parent=15 // pred_check
          %p157 = pneg %p52
        $region18: #{tpu_custom_call.1} parent=15 // pred_check_branch
          %159 = sbr.rel (%p157) target = $region20
        $region19: #{tpu_custom_call.1} parent=15 // pred_region
          %s160 = sand.u32 %s42, 1
          %s161 = scalar_lea.sflag [#allocation3], %s160
          %s162 = sand.u32 %s42, 1
          %s163 = smul.addr %s162, 32
          %s164 = scalar_lea.vmem [#allocation2], %s163
          %s165 = smul.u32 8, %s25
          %s167 = ssub.s32 512, 512
          %168 = vsyncadd %s161, %s167
          %s169 = sadd.s32 %s26, %s165
          %s170 = smul.addr %s169, 64
          %s171 = scalar_lea.hbm %s0, %s170
          %s172 = sshll.u32 %s164, 4
          %s173 = int_to_ptr.vmem [resolvable:$true] %s172
          %178 = dma.hbm_to_vmem [thread:$0]  %s171, 512, %s173, %s161, 64, 64, 4
        $region20: #{tpu_custom_call.1} parent=15 // pred_fallthru
          _
        // Predicated region
        $region21: #{tpu_custom_call.1} parent=15 // pred_check
          %p179 = pneg %p78
        $region22: #{tpu_custom_call.1} parent=15 // pred_check_branch
          %181 = sbr.rel (%p179) target = $region24
        $region23: #{tpu_custom_call.1} parent=15 // pred_region
          %s182 = sand.u32 %s18, 1
          %s183 = scalar_lea.sflag [#allocation6], %s182
          %s184 = sand.u32 %s68, 1
          %s185 = smul.addr %s184, 8
          %s186 = scalar_lea.vmem [#allocation5], %s185
          %s187 = smul.u32 8, %s25
          %s189 = ssub.s32 128, 128
          %190 = vsyncadd %s183, %s189
          %s191 = smul.addr %s187, 16
          %s192 = scalar_lea.hbm %s1, %s191
          %s193 = sshll.u32 %s186, 4
          %s194 = int_to_ptr.vmem [resolvable:$true] %s193
          %199 = dma.hbm_to_vmem [thread:$0]  %s192, 128, %s194, %s183, 16, 16, 1
        $region24: #{tpu_custom_call.1} parent=15 // pred_fallthru
          _
        // Predicated region
        $region25: #{tpu_custom_call.1} parent=15 // pred_check
          %p200 = pneg %p104
        $region26: #{tpu_custom_call.1} parent=15 // pred_check_branch
          %202 = sbr.rel (%p200) target = $region28
        $region27: #{tpu_custom_call.1} parent=15 // pred_region
          %s203 = sand.u32 %s18, 1
          %s204 = scalar_lea.sflag [#allocation6], %s203
          %s205 = sand.u32 %s94, 1
          %s206 = smul.addr %s205, 8
          %s207 = scalar_lea.vmem [#allocation7], %s206
          %s208 = smul.u32 8, %s25
          %s210 = ssub.s32 128, 128
          %211 = vsyncadd %s204, %s210
          %s212 = smul.addr %s208, 16
          %s213 = scalar_lea.hbm %s2, %s212
          %s214 = sshll.u32 %s207, 4
          %s215 = int_to_ptr.vmem [resolvable:$true] %s214
          %220 = dma.hbm_to_vmem [thread:$0]  %s213, 128, %s215, %s204, 16, 16, 1
        $region28: #{tpu_custom_call.1} parent=15 // pred_fallthru
          _
      $region16: #{tpu_custom_call.1} parent=5 // pred_fallthru
        _
      %p221 = scmp.le.s32.totalorder 1, %s18
      %p222 = scmp.lt.s32.totalorder %s18, 3
      %p223 = pnand %p221, %p222
      %p224 = pneg %p223
      // Predicated region
      $region29: #{tpu_custom_call.1} parent=5 // pred_check
        _
      $region30: #{tpu_custom_call.1} parent=5 // pred_check_branch
        %226 = sbr.rel (%p223) target = $region32
      $region31: #{tpu_custom_call.1} parent=5 // pred_region
        %s227 = ssub.s32 %s18, 1
        %s228 = sand.u32 %s45, 1
        %s229 = scalar_lea.sflag [#allocation3], %s228
        %s230 = sand.u32 %s45, 1
        %s231 = smul.addr %s230, 32
        %s232 = scalar_lea.vmem [#allocation2], %s231
        // Predicated region
        $region33: #{tpu_custom_call.1} parent=31 // pred_check
          %p233 = pneg %p58
        $region34: #{tpu_custom_call.1} parent=31 // pred_check_branch
          %235 = sbr.rel (%p233) target = $region36
        $region35: #{tpu_custom_call.1} parent=31 // pred_region
          %236 = dma.done %s229, 512
        $region36: #{tpu_custom_call.1} parent=31 // pred_fallthru
          _
        %s237 = sand.u32 %s23, 1
        %s238 = scalar_lea.sflag [#allocation6], %s237
        %s239 = sand.u32 %s71, 1
        %s240 = smul.addr %s239, 8
        %s241 = scalar_lea.vmem [#allocation5], %s240
        // Predicated region
        $region37: #{tpu_custom_call.1} parent=31 // pred_check
          %p242 = pneg %p84
        $region38: #{tpu_custom_call.1} parent=31 // pred_check_branch
          %244 = sbr.rel (%p242) target = $region40
        $region39: #{tpu_custom_call.1} parent=31 // pred_region
          %245 = dma.done %s238, 128
        $region40: #{tpu_custom_call.1} parent=31 // pred_fallthru
          _
        %s246 = sand.u32 %s23, 1
        %s247 = scalar_lea.sflag [#allocation6], %s246
        %s248 = sand.u32 %s97, 1
        %s249 = smul.addr %s248, 8
        %s250 = scalar_lea.vmem [#allocation7], %s249
        // Predicated region
        $region41: #{tpu_custom_call.1} parent=31 // pred_check
          %p251 = pneg %p110
        $region42: #{tpu_custom_call.1} parent=31 // pred_check_branch
          %253 = sbr.rel (%p251) target = $region44
        $region43: #{tpu_custom_call.1} parent=31 // pred_region
          %254 = dma.done %s247, 128
        $region44: #{tpu_custom_call.1} parent=31 // pred_fallthru
          _
        %s255 = sand.u32 %s45, 1
        %s256 = scalar_lea.sflag [#allocation3], %s255
        %s257 = sand.u32 %s45, 1
        %s258 = smul.addr %s257, 32
        %s259 = scalar_lea.vmem [#allocation2], %s258
        %p260 = pneg %p58
        %p261 = pneg %p55
        %s262 = sand.u32 %s23, 1
        %s263 = scalar_lea.sflag [#allocation6], %s262
        %s264 = sand.u32 %s71, 1
        %s265 = smul.addr %s264, 8
        %s266 = scalar_lea.vmem [#allocation5], %s265
        %p267 = pneg %p84
        %p268 = pneg %p81
        %s269 = sand.u32 %s23, 1
        %s270 = scalar_lea.sflag [#allocation6], %s269
        %s271 = sand.u32 %s97, 1
        %s272 = smul.addr %s271, 8
        %s273 = scalar_lea.vmem [#allocation7], %s272
        %p274 = pneg %p110
        %p275 = pneg %p107
        %p276 = pneg %p138
        %p277 = pneg %p135
        %s278 = sand.u32 %s125, 1
        %s279 = scalar_lea.sflag [#allocation4], %s278
        %s280 = sand.u32 %s125, 1
        %s281 = smul.addr %s280, 32
        %s282 = scalar_lea.vmem [#allocation8], %s281
        %s283 = smul.u32 8, %s27
        %s284 = smul.u32 8, %s27
        %s285 = smul.u32 8, %s27
        %s286 = smul.u32 8, %s27
        %v287 = vld [vmem:[%s232] sm:$0xf]
        %v288 = vld [vmem:[%s232 + $0x4] sm:$0xf]
        %v289 = vld [vmem:[%s232 + $0x8] sm:$0xf]
        %v290 = vld [vmem:[%s232 + $0xc] sm:$0xf]
        %v291 = vld [vmem:[%s232 + $0x10] sm:$0xf]
        %v292 = vld [vmem:[%s232 + $0x14] sm:$0xf]
        %v293 = vld [vmem:[%s232 + $0x18] sm:$0xf]
        %v294 = vld [vmem:[%s232 + $0x1c] sm:$0xf]
        %v295 = vld [vmem:[%s241] sm:$0x1]
        %v296 = vld [vmem:[%s241 + $0x1] sm:$0x1]
        %v297 = vld [vmem:[%s241 + $0x2] sm:$0x1]
        %v298 = vld [vmem:[%s241 + $0x3] sm:$0x1]
        %v299 = vld [vmem:[%s241 + $0x4] sm:$0x1]
        %v300 = vld [vmem:[%s241 + $0x5] sm:$0x1]
        %v301 = vld [vmem:[%s241 + $0x6] sm:$0x1]
        %v302 = vld [vmem:[%s241 + $0x7] sm:$0x1]
        %v303 = vld [vmem:[%s250] sm:$0x1]
        %v304 = vld [vmem:[%s250 + $0x1] sm:$0x1]
        %v305 = vld [vmem:[%s250 + $0x2] sm:$0x1]
        %v306 = vld [vmem:[%s250 + $0x3] sm:$0x1]
        %v307 = vld [vmem:[%s250 + $0x4] sm:$0x1]
        %v308 = vld [vmem:[%s250 + $0x5] sm:$0x1]
        %v309 = vld [vmem:[%s250 + $0x6] sm:$0x1]
        %v310 = vld [vmem:[%s250 + $0x7] sm:$0x1]
        %311 = vrot.lane.b32.xlu0 %v287, 32
        %v312 = vpop.permute.xlu0 %311
        %313 = vrot.lane.b32.xlu0 %v288, 32
        %v314 = vpop.permute.xlu0 %313
        %315 = vrot.lane.b32.xlu0 %v289, 32
        %v316 = vpop.permute.xlu0 %315
        %317 = vrot.lane.b32.xlu0 %v290, 32
        %v318 = vpop.permute.xlu0 %317
        %319 = vrot.lane.b32.xlu0 %v291, 32
        %v320 = vpop.permute.xlu0 %319
        %321 = vrot.lane.b32.xlu0 %v292, 32
        %v322 = vpop.permute.xlu0 %321
        %323 = vrot.lane.b32.xlu0 %v293, 32
        %v324 = vpop.permute.xlu0 %323
        %325 = vrot.lane.b32.xlu0 %v294, 32
        %v326 = vpop.permute.xlu0 %325
        %327 = vrot.lane.b32.xlu0 %v287, 96
        %v328 = vpop.permute.xlu0 %327
        %329 = vrot.lane.b32.xlu0 %v288, 96
        %v330 = vpop.permute.xlu0 %329
        %331 = vrot.lane.b32.xlu0 %v289, 96
        %v332 = vpop.permute.xlu0 %331
        %333 = vrot.lane.b32.xlu0 %v290, 96
        %v334 = vpop.permute.xlu0 %333
        %335 = vrot.lane.b32.xlu0 %v291, 96
        %v336 = vpop.permute.xlu0 %335
        %337 = vrot.lane.b32.xlu0 %v292, 96
        %v338 = vpop.permute.xlu0 %337
        %339 = vrot.lane.b32.xlu0 %v293, 96
        %v340 = vpop.permute.xlu0 %339
        %341 = vrot.lane.b32.xlu0 %v294, 96
        %v342 = vpop.permute.xlu0 %341
        %v343 = vlaneseq
        %v344 = vand.u32 %v343, 127
        %v345 = vand.u32 %v344, 63
        %vm346 = vcmp.ge.s32.totalorder %v345, 32
        %v347 = vsel %vm346, 1, 0
        %vm348 = vcmp.eq.s32.totalorder %v347, 1
        %v349 = vsel %vm348, %v312, %v328
        %v350 = vsel %vm348, %v314, %v330
        %v351 = vsel %vm348, %v316, %v332
        %v352 = vsel %vm348, %v318, %v334
        %v353 = vsel %vm348, %v320, %v336
        %v354 = vsel %vm348, %v322, %v338
        %v355 = vsel %vm348, %v324, %v340
        %v356 = vsel %vm348, %v326, %v342
        %v365 = vlaneseq
        %v366 = vshrl.u32 %v365, 7
        %v367 = vsub.s32 0, %v366
        %v368 = vrot.slane %v295, %v367
        %v369 = vlaneseq
        %v370 = vshrl.u32 %v369, 7
        %v371 = vsub.s32 0, %v370
        %v372 = vrot.slane %v296, %v371
        %v373 = vlaneseq
        %v374 = vshrl.u32 %v373, 7
        %v375 = vsub.s32 0, %v374
        %v376 = vrot.slane %v297, %v375
        %v377 = vlaneseq
        %v378 = vshrl.u32 %v377, 7
        %v379 = vsub.s32 0, %v378
        %v380 = vrot.slane %v298, %v379
        %v381 = vlaneseq
        %v382 = vshrl.u32 %v381, 7
        %v383 = vsub.s32 0, %v382
        %v384 = vrot.slane %v299, %v383
        %v385 = vlaneseq
        %v386 = vshrl.u32 %v385, 7
        %v387 = vsub.s32 0, %v386
        %v388 = vrot.slane %v300, %v387
        %v389 = vlaneseq
        %v390 = vshrl.u32 %v389, 7
        %v391 = vsub.s32 0, %v390
        %v392 = vrot.slane %v301, %v391
        %v393 = vlaneseq
        %v394 = vshrl.u32 %v393, 7
        %v395 = vsub.s32 0, %v394
        %v396 = vrot.slane %v302, %v395
        %v405 = vmul.f32 %v287, %v368
        %v406 = vmul.f32 %v288, %v372
        %v407 = vmul.f32 %v289, %v376
        %v408 = vmul.f32 %v290, %v380
        %v409 = vmul.f32 %v291, %v384
        %v410 = vmul.f32 %v292, %v388
        %v411 = vmul.f32 %v293, %v392
        %v412 = vmul.f32 %v294, %v396
        %v421 = vlaneseq
        %v422 = vshrl.u32 %v421, 7
        %v423 = vsub.s32 0, %v422
        %v424 = vrot.slane %v303, %v423
        %v425 = vlaneseq
        %v426 = vshrl.u32 %v425, 7
        %v427 = vsub.s32 0, %v426
        %v428 = vrot.slane %v304, %v427
        %v429 = vlaneseq
        %v430 = vshrl.u32 %v429, 7
        %v431 = vsub.s32 0, %v430
        %v432 = vrot.slane %v305, %v431
        %v433 = vlaneseq
        %v434 = vshrl.u32 %v433, 7
        %v435 = vsub.s32 0, %v434
        %v436 = vrot.slane %v306, %v435
        %v437 = vlaneseq
        %v438 = vshrl.u32 %v437, 7
        %v439 = vsub.s32 0, %v438
        %v440 = vrot.slane %v307, %v439
        %v441 = vlaneseq
        %v442 = vshrl.u32 %v441, 7
        %v443 = vsub.s32 0, %v442
        %v444 = vrot.slane %v308, %v443
        %v445 = vlaneseq
        %v446 = vshrl.u32 %v445, 7
        %v447 = vsub.s32 0, %v446
        %v448 = vrot.slane %v309, %v447
        %v449 = vlaneseq
        %v450 = vshrl.u32 %v449, 7
        %v451 = vsub.s32 0, %v450
        %v452 = vrot.slane %v310, %v451
        %v461 = vmul.f32 %v349, %v424
        %v462 = vmul.f32 %v350, %v428
        %v463 = vmul.f32 %v351, %v432
        %v464 = vmul.f32 %v352, %v436
        %v465 = vmul.f32 %v353, %v440
        %v466 = vmul.f32 %v354, %v444
        %v467 = vmul.f32 %v355, %v448
        %v468 = vmul.f32 %v356, %v452
        %v469 = vadd.f32 %v405, %v461
        %v470 = vadd.f32 %v406, %v462
        %v471 = vadd.f32 %v407, %v463
        %v472 = vadd.f32 %v408, %v464
        %v473 = vadd.f32 %v409, %v465
        %v474 = vadd.f32 %v410, %v466
        %v475 = vadd.f32 %v411, %v467
        %v476 = vadd.f32 %v412, %v468
        %477 = vst [vmem:[%s282] sm:$0xf] %v469
        %478 = vst [vmem:[%s282 + $0x4] sm:$0xf] %v470
        %479 = vst [vmem:[%s282 + $0x8] sm:$0xf] %v471
        %480 = vst [vmem:[%s282 + $0xc] sm:$0xf] %v472
        %481 = vst [vmem:[%s282 + $0x10] sm:$0xf] %v473
        %482 = vst [vmem:[%s282 + $0x14] sm:$0xf] %v474
        %483 = vst [vmem:[%s282 + $0x18] sm:$0xf] %v475
        %484 = vst [vmem:[%s282 + $0x1c] sm:$0xf] %v476
        %s485 = sand.u32 %s125, 1
        %s486 = scalar_lea.sflag [#allocation4], %s485
        %s487 = sand.u32 %s125, 1
        %s488 = smul.addr %s487, 32
        %s489 = scalar_lea.vmem [#allocation8], %s488
        // Predicated region
        $region45: #{tpu_custom_call.1} parent=31 // pred_check
          %p490 = pneg %p135
        $region46: #{tpu_custom_call.1} parent=31 // pred_check_branch
          %492 = sbr.rel (%p490) target = $region48
        $region47: #{tpu_custom_call.1} parent=31 // pred_region
          %s493 = smul.u32 8, %s27
          %s495 = ssub.s32 512, 512
          %496 = vsyncadd %s486, %s495
          %s497 = sadd.s32 %s28, %s493
          %s498 = smul.addr %s497, 64
          %s499 = scalar_lea.hbm %s3, %s498
          %s500 = sshll.u32 %s489, 4
          %s501 = int_to_ptr.vmem [resolvable:$true] %s500
          %506 = dma.vmem_to_hbm [thread:$0]  %s501, 512, %s499, %s486, 64, 64, 4
        $region48: #{tpu_custom_call.1} parent=31 // pred_fallthru
          _
      $region32: #{tpu_custom_call.1} parent=5 // pred_fallthru
        _
      %p507 = scmp.le.s32.totalorder 2, %s18
      // Predicated region
      $region49: #{tpu_custom_call.1} parent=5 // pred_check
        %p508 = pneg %p507
      $region50: #{tpu_custom_call.1} parent=5 // pred_check_branch
        %510 = sbr.rel (%p508) target = $region52
      $region51: #{tpu_custom_call.1} parent=5 // pred_region
        %s511 = ssub.s32 %s18, 2
        // Predicated region
        $region53: #{tpu_custom_call.1} parent=51 // pred_check
          %p512 = pneg %p141
        $region54: #{tpu_custom_call.1} parent=51 // pred_check_branch
          %514 = sbr.rel (%p512) target = $region56
        $region55: #{tpu_custom_call.1} parent=51 // pred_region
          %s515 = sand.u32 %s126, 1
          %s516 = scalar_lea.sflag [#allocation4], %s515
          %s517 = sand.u32 %s126, 1
          %s518 = smul.addr %s517, 32
          %s519 = scalar_lea.vmem [#allocation8], %s518
          %520 = dma.done %s516, 512
        $region56: #{tpu_custom_call.1} parent=51 // pred_fallthru
          _
      $region52: #{tpu_custom_call.1} parent=5 // pred_fallthru
        _
    $region6: #{tpu_custom_call.1} parent=1 // loop_footer
      %s22 = sadd.s32 1, %s18
    $region7: #{tpu_custom_call.1} parent=1 // loop_footer_branch
      %17 = sbr.rel target = $region3
    $region8: #{tpu_custom_call.1} parent=1 // loop_exit
      _
    %521 = vsyncpa [#allocation3], 1
    %s522 = scalar_lea.sflag [#allocation3], 1
    %523 = vsyncpa %s522, 1
    %524 = vsyncpa [#allocation6], 1
    %s525 = scalar_lea.sflag [#allocation6], 1
    %526 = vsyncpa %s525, 1
    %527 = vsyncpa [#allocation4], 1
    %s528 = scalar_lea.sflag [#allocation4], 1
    %529 = vsyncpa %s528, 1

</llo_original>
